<compile_context>
chip_gen: v5e
topology: v5e:2x2
jax: 0.10.0
libtpu: 0.0.40
codegen_flags: <defaults>
</compile_context>

<pallas_src>
import functools

import jax
import jax.numpy as jnp
from jax.experimental import pallas as pl
from jax.experimental.pallas import tpu as pltpu


def _round_up(x, m):
    return ((x + m - 1) // m) * m


def _autoencoder_kernel(x_ref, *refs):
    """refs = (w1, b1, ..., w8, b8, out_ref).

    x_ref: (TILE_B, n_features) f32 activation tile (pipelined per grid step).
    Weights (bf16, (in, out)) and biases (f32, (1, out)) are grid-invariant
    and stay VMEM-resident. All matmuls run on the MXU with f32 accumulation.
    """
    out_ref = refs[-1]
    param_refs = refs[:-1]
    n_layers = len(param_refs) // 2

    # Cast to bf16 inside the kernel (VPU has slack); x arrives as raw f32.
    z = x_ref[...].astype(jnp.bfloat16)
    for i in range(n_layers):
        w = param_refs[2 * i][...]               # bf16 (in, out)
        b = param_refs[2 * i + 1][...]           # f32  (1, out)
        acc = jnp.dot(z, w, preferred_element_type=jnp.float32) + b
        if i < n_layers - 1:                     # last layer (dec1): no ReLU
            z = jnp.maximum(acc, 0.0).astype(jnp.bfloat16)
        else:
            z = acc                              # keep f32 for the final store
    out_ref[...] = z.astype(out_ref.dtype)       # lane-dense (TILE_B, 128) store


@functools.partial(jax.jit, static_argnames=("tile_b", "out_dtype"))
def autoencoder_forward(x, flat_params, tile_b=8192, out_dtype=jnp.float32):
    """x: (B, n_features) f32. flat_params: [w1, b1, ..., w8, b8] (w as (in, out))."""
    B, n_in = x.shape
    n_out = flat_params[-2].shape[1]

    # Batch tile: as large as possible (amortize per-step overhead), but
    #   * 16-row aligned (covers f32 and bf16 sublane tiling),
    #   * never much larger than the batch,
    #   * >=2 grid steps once there are >=32 rows so v7x's two TensorCores
    #     both get a share of the "parallel" batch axis.
    b_ceil = _round_up(B, 16)
    tile = min(_round_up(max(tile_b, 16), 16), b_ceil)
    if b_ceil >= 32:
        tile = min(tile, _round_up((b_ceil + 1) // 2, 16))
    grid = (pl.cdiv(B, tile),)   # trailing partial tile handled by Pallas masking

    # bf16 weights (MXU inputs), f32 biases (added after f32 accumulation).
    params = []
    for j in range(0, len(flat_params), 2):
        params.append(flat_params[j].astype(jnp.bfloat16))
        params.append(flat_params[j + 1].astype(jnp.float32).reshape(1, -1))

    in_specs = [pl.BlockSpec((tile, n_in), lambda i: (i, 0))]
    for p in params:
        # Constant index_map -> single DMA, VMEM-resident across all grid
        # steps (~92 KiB total params; never worth K-tiling).
        in_specs.append(pl.BlockSpec(p.shape, lambda i: (0, 0)))
    out_specs = pl.BlockSpec((tile, n_out), lambda i: (i, 0))

    flops = 2 * B * sum(
        flat_params[2 * j].shape[0] * flat_params[2 * j].shape[1]
        for j in range(len(flat_params) // 2))
    bytes_accessed = (
        x.size * x.dtype.itemsize                       # f32 input stream
        + B * n_out * jnp.dtype(out_dtype).itemsize     # output stream
        + sum(p.size * p.dtype.itemsize for p in params))

    return pl.pallas_call(
        _autoencoder_kernel,
        out_shape=jax.ShapeDtypeStruct((B, n_out), out_dtype),
        grid=grid,
        in_specs=in_specs,
        out_specs=out_specs,
        compiler_params=pltpu.CompilerParams(
            dimension_semantics=("parallel",),
            # Big tiles + unrolled 8-layer chain: raise v5e's 16 MiB scoped
            # default, stay well under v7x's 64 MiB physical VMEM per core.
            vmem_limit_bytes=48 * 1024 * 1024),
        cost_estimate=pl.CostEstimate(
            flops=flops, transcendentals=0, bytes_accessed=bytes_accessed),
    )(x, *params)


def init_params(key, n_features):
    """Deterministic init mimicking nn.Linear default (U(-k, k), k=1/sqrt(in))."""
    n = n_features
    dims = [n, n // 2, n // 4, n // 4, n // 8, n // 4, n // 4, n // 2, n]
    flat = []
    for i in range(len(dims) - 1):
        fan_in, fan_out = dims[i], dims[i + 1]
        key, kw, kb = jax.random.split(key, 3)
        bound = 1.0 / jnp.sqrt(jnp.float32(fan_in))
        # Stored as (in, out): equivalent to PyTorch weight (out, in) transposed.
        w = jax.random.uniform(kw, (fan_in, fan_out), jnp.float32, -bound, bound)
        b = jax.random.uniform(kb, (1, fan_out), jnp.float32, -bound, bound)
        flat += [w, b]
    return flat


def reference_forward(x, flat_params, compute_dtype=jnp.float32):
    """Plain-JAX reference. compute_dtype=bf16 mirrors the kernel's cast pattern."""
    z = x.astype(compute_dtype)
    n_layers = len(flat_params) // 2
    for i in range(n_layers):
        w = flat_params[2 * i].astype(compute_dtype)
        b = flat_params[2 * i + 1].astype(jnp.float32)
        z = jnp.dot(z, w, preferred_element_type=jnp.float32) + b
        if i < n_layers - 1:
            z = jnp.maximum(z, 0.0).astype(compute_dtype)
    return z.astype(jnp.float32)


if __name__ == "__main__":
    key = jax.random.PRNGKey(0)
    n_features = 128   # divisible by 8 -> bottleneck of 16 features
    batch = 16

    key, kx = jax.random.split(key)
    x = jax.random.normal(kx, (batch, n_features), jnp.float32)
    flat_params = init_params(key, n_features)

    out = jax.block_until_ready(autoencoder_forward(x, flat_params))
    assert out.shape == (batch, n_features)
    assert out.dtype == jnp.float32

    # Tight check vs a bf16-path reference (same cast pattern as the kernel).
    ref_bf16 = reference_forward(x, flat_params, compute_dtype=jnp.bfloat16)
    assert jnp.allclose(out, ref_bf16, atol=1e-2, rtol=1e-2), "mismatch vs bf16 ref"
    # Loose sanity check vs the pure-f32 reference (bf16 quantization error).
    ref_f32 = reference_forward(x, flat_params, compute_dtype=jnp.float32)
    assert jnp.allclose(out, ref_f32, atol=1e-1, rtol=1e-1), "mismatch vs f32 ref"

    # Exercise a multi-step grid + partial trailing batch tile (no pad/slice):
    # B=1030 -> tile=528, grid=(2,), last tile covers only 502 valid rows.
    key, kx2 = jax.random.split(key)
    x2 = jax.random.normal(kx2, (1030, n_features), jnp.float32)
    out2 = jax.block_until_ready(autoencoder_forward(x2, flat_params))
    ref2 = reference_forward(x2, flat_params, compute_dtype=jnp.bfloat16)
    assert out2.shape == x2.shape
    assert jnp.allclose(out2, ref2, atol=1e-2, rtol=1e-2), "mismatch (tiled batch)"

    # Optional bf16 output path (halves the dominant output HBM stream).
    out3 = jax.block_until_ready(
        autoencoder_forward(x, flat_params, out_dtype=jnp.bfloat16))
    assert out3.dtype == jnp.bfloat16
    assert jnp.allclose(out3.astype(jnp.float32), ref_bf16, atol=3e-2, rtol=3e-2), \
        "mismatch (bf16 output)"

    print("KERNEL_OK")
</pallas_src>

<mosaic_0001>
module attributes {stable_mosaic.version = 11 : i64} {
  func.func @_autoencoder_kernel(%arg0: i32, %arg1: memref<16x128xf32, #tpu.memory_space<vmem>>, %arg2: memref<128x64xbf16, #tpu.memory_space<vmem>>, %arg3: memref<1x64xf32, #tpu.memory_space<vmem>>, %arg4: memref<64x32xbf16, #tpu.memory_space<vmem>>, %arg5: memref<1x32xf32, #tpu.memory_space<vmem>>, %arg6: memref<32x32xbf16, #tpu.memory_space<vmem>>, %arg7: memref<1x32xf32, #tpu.memory_space<vmem>>, %arg8: memref<32x16xbf16, #tpu.memory_space<vmem>>, %arg9: memref<1x16xf32, #tpu.memory_space<vmem>>, %arg10: memref<16x32xbf16, #tpu.memory_space<vmem>>, %arg11: memref<1x32xf32, #tpu.memory_space<vmem>>, %arg12: memref<32x32xbf16, #tpu.memory_space<vmem>>, %arg13: memref<1x32xf32, #tpu.memory_space<vmem>>, %arg14: memref<32x64xbf16, #tpu.memory_space<vmem>>, %arg15: memref<1x64xf32, #tpu.memory_space<vmem>>, %arg16: memref<64x128xbf16, #tpu.memory_space<vmem>>, %arg17: memref<1x128xf32, #tpu.memory_space<vmem>>, %arg18: memref<16x128xf32, #tpu.memory_space<vmem>>) attributes {dimension_semantics = [#tpu.dimension_semantics<parallel>], iteration_bounds = array<i64: 1>, scalar_prefetch = 0 : i64, scratch_operands = 0 : i64, tpu.core_type = #tpu.core_type<tc>, window_params = [{transform_indices = @transform_0, window_bounds = array<i64: 16, 128>}, {pipeline_mode = #tpu.pipeline_mode<synchronous>, transform_indices = @transform_1, window_bounds = array<i64: 128, 64>}, {pipeline_mode = #tpu.pipeline_mode<synchronous>, transform_indices = @transform_2, window_bounds = array<i64: 1, 64>}, {pipeline_mode = #tpu.pipeline_mode<synchronous>, transform_indices = @transform_3, window_bounds = array<i64: 64, 32>}, {pipeline_mode = #tpu.pipeline_mode<synchronous>, transform_indices = @transform_4, window_bounds = array<i64: 1, 32>}, {pipeline_mode = #tpu.pipeline_mode<synchronous>, transform_indices = @transform_5, window_bounds = array<i64: 32, 32>}, {pipeline_mode = #tpu.pipeline_mode<synchronous>, transform_indices = @transform_6, window_bounds = array<i64: 1, 32>}, {pipeline_mode = #tpu.pipeline_mode<synchronous>, transform_indices = @transform_7, window_bounds = array<i64: 32, 16>}, {pipeline_mode = #tpu.pipeline_mode<synchronous>, transform_indices = @transform_8, window_bounds = array<i64: 1, 16>}, {pipeline_mode = #tpu.pipeline_mode<synchronous>, transform_indices = @transform_9, window_bounds = array<i64: 16, 32>}, {pipeline_mode = #tpu.pipeline_mode<synchronous>, transform_indices = @transform_10, window_bounds = array<i64: 1, 32>}, {pipeline_mode = #tpu.pipeline_mode<synchronous>, transform_indices = @transform_11, window_bounds = array<i64: 32, 32>}, {pipeline_mode = #tpu.pipeline_mode<synchronous>, transform_indices = @transform_12, window_bounds = array<i64: 1, 32>}, {pipeline_mode = #tpu.pipeline_mode<synchronous>, transform_indices = @transform_13, window_bounds = array<i64: 32, 64>}, {pipeline_mode = #tpu.pipeline_mode<synchronous>, transform_indices = @transform_14, window_bounds = array<i64: 1, 64>}, {pipeline_mode = #tpu.pipeline_mode<synchronous>, transform_indices = @transform_15, window_bounds = array<i64: 64, 128>}, {pipeline_mode = #tpu.pipeline_mode<synchronous>, transform_indices = @transform_16, window_bounds = array<i64: 1, 128>}, {transform_indices = @transform_17, window_bounds = array<i64: 16, 128>}]} {
    %c0 = arith.constant 0 : index
    %c0_0 = arith.constant 0 : index
    %0 = vector.load %arg1[%c0, %c0_0] : memref<16x128xf32, #tpu.memory_space<vmem>>, vector<16x128xf32>
    %1 = arith.truncf %0 : vector<16x128xf32> to vector<16x128xbf16>
    %c0_1 = arith.constant 0 : index
    %c0_2 = arith.constant 0 : index
    %2 = vector.load %arg2[%c0_1, %c0_2] : memref<128x64xbf16, #tpu.memory_space<vmem>>, vector<128x64xbf16>
    %c0_3 = arith.constant 0 : index
    %c0_4 = arith.constant 0 : index
    %3 = vector.load %arg3[%c0_3, %c0_4] : memref<1x64xf32, #tpu.memory_space<vmem>>, vector<1x64xf32>
    %cst = arith.constant dense<0.000000e+00> : vector<16x64xf32>
    %4 = tpu.matmul %1, %2, %cst {dimension_numbers = #tpu.dot_dimension_numbers<[1], [0], [0], [1], [0, 0, 1, 1], [], []>} : vector<16x128xbf16>, vector<128x64xbf16>, vector<16x64xf32> -> vector<16x64xf32>
    %5 = vector.broadcast %3 : vector<1x64xf32> to vector<16x64xf32>
    %6 = arith.addf %4, %5 : vector<16x64xf32>
    %cst_5 = arith.constant 0.000000e+00 : f32
    %7 = vector.broadcast %cst_5 : f32 to vector<16x64xf32>
    %8 = arith.maximumf %6, %7 : vector<16x64xf32>
    %9 = arith.truncf %8 : vector<16x64xf32> to vector<16x64xbf16>
    %c0_6 = arith.constant 0 : index
    %c0_7 = arith.constant 0 : index
    %10 = vector.load %arg4[%c0_6, %c0_7] : memref<64x32xbf16, #tpu.memory_space<vmem>>, vector<64x32xbf16>
    %c0_8 = arith.constant 0 : index
    %c0_9 = arith.constant 0 : index
    %11 = vector.load %arg5[%c0_8, %c0_9] : memref<1x32xf32, #tpu.memory_space<vmem>>, vector<1x32xf32>
    %cst_10 = arith.constant dense<0.000000e+00> : vector<16x32xf32>
    %12 = tpu.matmul %9, %10, %cst_10 {dimension_numbers = #tpu.dot_dimension_numbers<[1], [0], [0], [1], [0, 0, 1, 1], [], []>} : vector<16x64xbf16>, vector<64x32xbf16>, vector<16x32xf32> -> vector<16x32xf32>
    %13 = vector.broadcast %11 : vector<1x32xf32> to vector<16x32xf32>
    %14 = arith.addf %12, %13 : vector<16x32xf32>
    %cst_11 = arith.constant 0.000000e+00 : f32
    %15 = vector.broadcast %cst_11 : f32 to vector<16x32xf32>
    %16 = arith.maximumf %14, %15 : vector<16x32xf32>
    %17 = arith.truncf %16 : vector<16x32xf32> to vector<16x32xbf16>
    %c0_12 = arith.constant 0 : index
    %c0_13 = arith.constant 0 : index
    %18 = vector.load %arg6[%c0_12, %c0_13] : memref<32x32xbf16, #tpu.memory_space<vmem>>, vector<32x32xbf16>
    %c0_14 = arith.constant 0 : index
    %c0_15 = arith.constant 0 : index
    %19 = vector.load %arg7[%c0_14, %c0_15] : memref<1x32xf32, #tpu.memory_space<vmem>>, vector<1x32xf32>
    %cst_16 = arith.constant dense<0.000000e+00> : vector<16x32xf32>
    %20 = tpu.matmul %17, %18, %cst_16 {dimension_numbers = #tpu.dot_dimension_numbers<[1], [0], [0], [1], [0, 0, 1, 1], [], []>} : vector<16x32xbf16>, vector<32x32xbf16>, vector<16x32xf32> -> vector<16x32xf32>
    %21 = vector.broadcast %19 : vector<1x32xf32> to vector<16x32xf32>
    %22 = arith.addf %20, %21 : vector<16x32xf32>
    %cst_17 = arith.constant 0.000000e+00 : f32
    %23 = vector.broadcast %cst_17 : f32 to vector<16x32xf32>
    %24 = arith.maximumf %22, %23 : vector<16x32xf32>
    %25 = arith.truncf %24 : vector<16x32xf32> to vector<16x32xbf16>
    %c0_18 = arith.constant 0 : index
    %c0_19 = arith.constant 0 : index
    %26 = vector.load %arg8[%c0_18, %c0_19] : memref<32x16xbf16, #tpu.memory_space<vmem>>, vector<32x16xbf16>
    %c0_20 = arith.constant 0 : index
    %c0_21 = arith.constant 0 : index
    %27 = vector.load %arg9[%c0_20, %c0_21] : memref<1x16xf32, #tpu.memory_space<vmem>>, vector<1x16xf32>
    %cst_22 = arith.constant dense<0.000000e+00> : vector<16x16xf32>
    %28 = tpu.matmul %25, %26, %cst_22 {dimension_numbers = #tpu.dot_dimension_numbers<[1], [0], [0], [1], [0, 0, 1, 1], [], []>} : vector<16x32xbf16>, vector<32x16xbf16>, vector<16x16xf32> -> vector<16x16xf32>
    %29 = vector.broadcast %27 : vector<1x16xf32> to vector<16x16xf32>
    %30 = arith.addf %28, %29 : vector<16x16xf32>
    %cst_23 = arith.constant 0.000000e+00 : f32
    %31 = vector.broadcast %cst_23 : f32 to vector<16x16xf32>
    %32 = arith.maximumf %30, %31 : vector<16x16xf32>
    %33 = arith.truncf %32 : vector<16x16xf32> to vector<16x16xbf16>
    %c0_24 = arith.constant 0 : index
    %c0_25 = arith.constant 0 : index
    %34 = vector.load %arg10[%c0_24, %c0_25] : memref<16x32xbf16, #tpu.memory_space<vmem>>, vector<16x32xbf16>
    %c0_26 = arith.constant 0 : index
    %c0_27 = arith.constant 0 : index
    %35 = vector.load %arg11[%c0_26, %c0_27] : memref<1x32xf32, #tpu.memory_space<vmem>>, vector<1x32xf32>
    %cst_28 = arith.constant dense<0.000000e+00> : vector<16x32xf32>
    %36 = tpu.matmul %33, %34, %cst_28 {dimension_numbers = #tpu.dot_dimension_numbers<[1], [0], [0], [1], [0, 0, 1, 1], [], []>} : vector<16x16xbf16>, vector<16x32xbf16>, vector<16x32xf32> -> vector<16x32xf32>
    %37 = vector.broadcast %35 : vector<1x32xf32> to vector<16x32xf32>
    %38 = arith.addf %36, %37 : vector<16x32xf32>
    %cst_29 = arith.constant 0.000000e+00 : f32
    %39 = vector.broadcast %cst_29 : f32 to vector<16x32xf32>
    %40 = arith.maximumf %38, %39 : vector<16x32xf32>
    %41 = arith.truncf %40 : vector<16x32xf32> to vector<16x32xbf16>
    %c0_30 = arith.constant 0 : index
    %c0_31 = arith.constant 0 : index
    %42 = vector.load %arg12[%c0_30, %c0_31] : memref<32x32xbf16, #tpu.memory_space<vmem>>, vector<32x32xbf16>
    %c0_32 = arith.constant 0 : index
    %c0_33 = arith.constant 0 : index
    %43 = vector.load %arg13[%c0_32, %c0_33] : memref<1x32xf32, #tpu.memory_space<vmem>>, vector<1x32xf32>
    %cst_34 = arith.constant dense<0.000000e+00> : vector<16x32xf32>
    %44 = tpu.matmul %41, %42, %cst_34 {dimension_numbers = #tpu.dot_dimension_numbers<[1], [0], [0], [1], [0, 0, 1, 1], [], []>} : vector<16x32xbf16>, vector<32x32xbf16>, vector<16x32xf32> -> vector<16x32xf32>
    %45 = vector.broadcast %43 : vector<1x32xf32> to vector<16x32xf32>
    %46 = arith.addf %44, %45 : vector<16x32xf32>
    %cst_35 = arith.constant 0.000000e+00 : f32
    %47 = vector.broadcast %cst_35 : f32 to vector<16x32xf32>
    %48 = arith.maximumf %46, %47 : vector<16x32xf32>
    %49 = arith.truncf %48 : vector<16x32xf32> to vector<16x32xbf16>
    %c0_36 = arith.constant 0 : index
    %c0_37 = arith.constant 0 : index
    %50 = vector.load %arg14[%c0_36, %c0_37] : memref<32x64xbf16, #tpu.memory_space<vmem>>, vector<32x64xbf16>
    %c0_38 = arith.constant 0 : index
    %c0_39 = arith.constant 0 : index
    %51 = vector.load %arg15[%c0_38, %c0_39] : memref<1x64xf32, #tpu.memory_space<vmem>>, vector<1x64xf32>
    %cst_40 = arith.constant dense<0.000000e+00> : vector<16x64xf32>
    %52 = tpu.matmul %49, %50, %cst_40 {dimension_numbers = #tpu.dot_dimension_numbers<[1], [0], [0], [1], [0, 0, 1, 1], [], []>} : vector<16x32xbf16>, vector<32x64xbf16>, vector<16x64xf32> -> vector<16x64xf32>
    %53 = vector.broadcast %51 : vector<1x64xf32> to vector<16x64xf32>
    %54 = arith.addf %52, %53 : vector<16x64xf32>
    %cst_41 = arith.constant 0.000000e+00 : f32
    %55 = vector.broadcast %cst_41 : f32 to vector<16x64xf32>
    %56 = arith.maximumf %54, %55 : vector<16x64xf32>
    %57 = arith.truncf %56 : vector<16x64xf32> to vector<16x64xbf16>
    %c0_42 = arith.constant 0 : index
    %c0_43 = arith.constant 0 : index
    %58 = vector.load %arg16[%c0_42, %c0_43] : memref<64x128xbf16, #tpu.memory_space<vmem>>, vector<64x128xbf16>
    %c0_44 = arith.constant 0 : index
    %c0_45 = arith.constant 0 : index
    %59 = vector.load %arg17[%c0_44, %c0_45] : memref<1x128xf32, #tpu.memory_space<vmem>>, vector<1x128xf32>
    %cst_46 = arith.constant dense<0.000000e+00> : vector<16x128xf32>
    %60 = tpu.matmul %57, %58, %cst_46 {dimension_numbers = #tpu.dot_dimension_numbers<[1], [0], [0], [1], [0, 0, 1, 1], [], []>} : vector<16x64xbf16>, vector<64x128xbf16>, vector<16x128xf32> -> vector<16x128xf32>
    %61 = vector.broadcast %59 : vector<1x128xf32> to vector<16x128xf32>
    %62 = arith.addf %60, %61 : vector<16x128xf32>
    %c0_47 = arith.constant 0 : index
    %c0_48 = arith.constant 0 : index
    %63 = vector.load %arg18[%c0_47, %c0_48] : memref<16x128xf32, #tpu.memory_space<vmem>>, vector<16x128xf32>
    tpu.vector_store %arg18[%c0_47, %c0_48], %62 {strides = array<i32>} : memref<16x128xf32, #tpu.memory_space<vmem>>, vector<16x128xf32>,
    return
  }
  func.func @transform_0(%arg0: i32) -> (i32, i32) {
    %c0_i32 = arith.constant 0 : i32
    %c0_i32_0 = arith.constant 0 : i32
    return %arg0, %c0_i32 : i32, i32
  }
  func.func @transform_1(%arg0: i32) -> (i32, i32) {
    %c0_i32 = arith.constant 0 : i32
    %c0_i32_0 = arith.constant 0 : i32
    %c0_i32_1 = arith.constant 0 : i32
    return %c0_i32, %c0_i32_0 : i32, i32
  }
  func.func @transform_2(%arg0: i32) -> (i32, i32) {
    %c0_i32 = arith.constant 0 : i32
    %c0_i32_0 = arith.constant 0 : i32
    %c0_i32_1 = arith.constant 0 : i32
    return %c0_i32, %c0_i32_0 : i32, i32
  }
  func.func @transform_3(%arg0: i32) -> (i32, i32) {
    %c0_i32 = arith.constant 0 : i32
    %c0_i32_0 = arith.constant 0 : i32
    %c0_i32_1 = arith.constant 0 : i32
    return %c0_i32, %c0_i32_0 : i32, i32
  }
  func.func @transform_4(%arg0: i32) -> (i32, i32) {
    %c0_i32 = arith.constant 0 : i32
    %c0_i32_0 = arith.constant 0 : i32
    %c0_i32_1 = arith.constant 0 : i32
    return %c0_i32, %c0_i32_0 : i32, i32
  }
  func.func @transform_5(%arg0: i32) -> (i32, i32) {
    %c0_i32 = arith.constant 0 : i32
    %c0_i32_0 = arith.constant 0 : i32
    %c0_i32_1 = arith.constant 0 : i32
    return %c0_i32, %c0_i32_0 : i32, i32
  }
  func.func @transform_6(%arg0: i32) -> (i32, i32) {
    %c0_i32 = arith.constant 0 : i32
    %c0_i32_0 = arith.constant 0 : i32
    %c0_i32_1 = arith.constant 0 : i32
    return %c0_i32, %c0_i32_0 : i32, i32
  }
  func.func @transform_7(%arg0: i32) -> (i32, i32) {
    %c0_i32 = arith.constant 0 : i32
    %c0_i32_0 = arith.constant 0 : i32
    %c0_i32_1 = arith.constant 0 : i32
    return %c0_i32, %c0_i32_0 : i32, i32
  }
  func.func @transform_8(%arg0: i32) -> (i32, i32) {
    %c0_i32 = arith.constant 0 : i32
    %c0_i32_0 = arith.constant 0 : i32
    %c0_i32_1 = arith.constant 0 : i32
    return %c0_i32, %c0_i32_0 : i32, i32
  }
  func.func @transform_9(%arg0: i32) -> (i32, i32) {
    %c0_i32 = arith.constant 0 : i32
    %c0_i32_0 = arith.constant 0 : i32
    %c0_i32_1 = arith.constant 0 : i32
    return %c0_i32, %c0_i32_0 : i32, i32
  }
  func.func @transform_10(%arg0: i32) -> (i32, i32) {
    %c0_i32 = arith.constant 0 : i32
    %c0_i32_0 = arith.constant 0 : i32
    %c0_i32_1 = arith.constant 0 : i32
    return %c0_i32, %c0_i32_0 : i32, i32
  }
  func.func @transform_11(%arg0: i32) -> (i32, i32) {
    %c0_i32 = arith.constant 0 : i32
    %c0_i32_0 = arith.constant 0 : i32
    %c0_i32_1 = arith.constant 0 : i32
    return %c0_i32, %c0_i32_0 : i32, i32
  }
  func.func @transform_12(%arg0: i32) -> (i32, i32) {
    %c0_i32 = arith.constant 0 : i32
    %c0_i32_0 = arith.constant 0 : i32
    %c0_i32_1 = arith.constant 0 : i32
    return %c0_i32, %c0_i32_0 : i32, i32
  }
  func.func @transform_13(%arg0: i32) -> (i32, i32) {
    %c0_i32 = arith.constant 0 : i32
    %c0_i32_0 = arith.constant 0 : i32
    %c0_i32_1 = arith.constant 0 : i32
    return %c0_i32, %c0_i32_0 : i32, i32
  }
  func.func @transform_14(%arg0: i32) -> (i32, i32) {
    %c0_i32 = arith.constant 0 : i32
    %c0_i32_0 = arith.constant 0 : i32
    %c0_i32_1 = arith.constant 0 : i32
    return %c0_i32, %c0_i32_0 : i32, i32
  }
  func.func @transform_15(%arg0: i32) -> (i32, i32) {
    %c0_i32 = arith.constant 0 : i32
    %c0_i32_0 = arith.constant 0 : i32
    %c0_i32_1 = arith.constant 0 : i32
    return %c0_i32, %c0_i32_0 : i32, i32
  }
  func.func @transform_16(%arg0: i32) -> (i32, i32) {
    %c0_i32 = arith.constant 0 : i32
    %c0_i32_0 = arith.constant 0 : i32
    %c0_i32_1 = arith.constant 0 : i32
    return %c0_i32, %c0_i32_0 : i32, i32
  }
  func.func @transform_17(%arg0: i32) -> (i32, i32) {
    %c0_i32 = arith.constant 0 : i32
    %c0_i32_0 = arith.constant 0 : i32
    return %arg0, %c0_i32 : i32, i32
  }
}

</mosaic_0001>

<llo_original>
// kernel: autoencoder_forward.1
$region0: #{autoencoder_forward.1}
  #allocation0 [shape = 'u32[]', space=smem, size = 0x4, offset = 0x4, fixed_abs, tag = 'smem constant byte address 0x4 - core index']
  #allocation1 [shape = 'u32[72,128]{1,0:T(1,128)}', space=vmem, size = 0x9000, scoped, tag = 'internal scratch']
  %s0 = inlined_call_operand.vmem [shape: f32[16,128], index: 0, kind: input, shape index: {}]
  %s1 = inlined_call_operand.vmem [shape: bf16[128,64], index: 1, kind: input, shape index: {}]
  %s2 = inlined_call_operand.vmem [shape: f32[1,64], index: 2, kind: input, shape index: {}]
  %s3 = inlined_call_operand.vmem [shape: bf16[64,32], index: 3, kind: input, shape index: {}]
  %s4 = inlined_call_operand.vmem [shape: f32[1,32], index: 4, kind: input, shape index: {}]
  %s5 = inlined_call_operand.vmem [shape: bf16[32,32], index: 5, kind: input, shape index: {}]
  %s6 = inlined_call_operand.vmem [shape: f32[1,32], index: 6, kind: input, shape index: {}]
  %s7 = inlined_call_operand.vmem [shape: bf16[32,16], index: 7, kind: input, shape index: {}]
  %s8 = inlined_call_operand.vmem [shape: f32[1,16], index: 8, kind: input, shape index: {}]
  %s9 = inlined_call_operand.vmem [shape: bf16[16,32], index: 9, kind: input, shape index: {}]
  %s10 = inlined_call_operand.vmem [shape: f32[1,32], index: 10, kind: input, shape index: {}]
  %s11 = inlined_call_operand.vmem [shape: bf16[32,32], index: 11, kind: input, shape index: {}]
  %s12 = inlined_call_operand.vmem [shape: f32[1,32], index: 12, kind: input, shape index: {}]
  %s13 = inlined_call_operand.vmem [shape: bf16[32,64], index: 13, kind: input, shape index: {}]
  %s14 = inlined_call_operand.vmem [shape: f32[1,64], index: 14, kind: input, shape index: {}]
  %s15 = inlined_call_operand.vmem [shape: bf16[64,128], index: 15, kind: input, shape index: {}]
  %s16 = inlined_call_operand.vmem [shape: f32[1,128], index: 16, kind: input, shape index: {}]
  %s17 = inlined_call_operand.hbm [shape: f32[16,128], index: 17, kind: output, shape index: {}]
  %s18 = sld [smem:[#allocation0]]
  $region78: #{autoencoder_forward.1} parent=0
    _
  %s20 = ssub.s32 1, %s18
  %s21 = scalar_select 0, %s20, %s18
  $region1: #{autoencoder_forward.1} parent=0
    #allocation2 [shape = 'u8[8192]{0}', space=vmem, size = 0x2000, scoped, tag = 'output window, operand 0, single buffered']
    #allocation3 [shape = 's32[1]{0}', space=sflag, size = 0x4, scoped, tag = 'scoped memory for autoencoder_forward.1']
    %22 = vsyncpa [#allocation3], 0
    // Predicated region
    $region2: #{autoencoder_forward.1} parent=1 // pred_check
      _
    $region3: #{autoencoder_forward.1} parent=1 // pred_check_branch
      %24 = sbr.rel (0) target = $region5
    $region4: #{autoencoder_forward.1} parent=1 // pred_region
      _
    $region5: #{autoencoder_forward.1} parent=1 // pred_fallthru
      _
    // Predicated region
    $region6: #{autoencoder_forward.1} parent=1 // pred_check
      _
    $region7: #{autoencoder_forward.1} parent=1 // pred_check_branch
      %26 = sbr.rel (0) target = $region9
    $region8: #{autoencoder_forward.1} parent=1 // pred_region
      _
    $region9: #{autoencoder_forward.1} parent=1 // pred_fallthru
      _
    // Predicated region
    $region10: #{autoencoder_forward.1} parent=1 // pred_check
      _
    $region11: #{autoencoder_forward.1} parent=1 // pred_check_branch
      %28 = sbr.rel (0) target = $region13
    $region12: #{autoencoder_forward.1} parent=1 // pred_region
      _
    $region13: #{autoencoder_forward.1} parent=1 // pred_fallthru
      _
    // Predicated region
    $region14: #{autoencoder_forward.1} parent=1 // pred_check
      _
    $region15: #{autoencoder_forward.1} parent=1 // pred_check_branch
      %30 = sbr.rel (0) target = $region17
    $region16: #{autoencoder_forward.1} parent=1 // pred_region
      _
    $region17: #{autoencoder_forward.1} parent=1 // pred_fallthru
      _
    // Predicated region
    $region18: #{autoencoder_forward.1} parent=1 // pred_check
      _
    $region19: #{autoencoder_forward.1} parent=1 // pred_check_branch
      %32 = sbr.rel (0) target = $region21
    $region20: #{autoencoder_forward.1} parent=1 // pred_region
      _
    $region21: #{autoencoder_forward.1} parent=1 // pred_fallthru
      _
    // Predicated region
    $region22: #{autoencoder_forward.1} parent=1 // pred_check
      _
    $region23: #{autoencoder_forward.1} parent=1 // pred_check_branch
      %34 = sbr.rel (0) target = $region25
    $region24: #{autoencoder_forward.1} parent=1 // pred_region
      _
    $region25: #{autoencoder_forward.1} parent=1 // pred_fallthru
      _
    // Predicated region
    $region26: #{autoencoder_forward.1} parent=1 // pred_check
      _
    $region27: #{autoencoder_forward.1} parent=1 // pred_check_branch
      %36 = sbr.rel (0) target = $region29
    $region28: #{autoencoder_forward.1} parent=1 // pred_region
      _
    $region29: #{autoencoder_forward.1} parent=1 // pred_fallthru
      _
    // Predicated region
    $region30: #{autoencoder_forward.1} parent=1 // pred_check
      _
    $region31: #{autoencoder_forward.1} parent=1 // pred_check_branch
      %38 = sbr.rel (0) target = $region33
    $region32: #{autoencoder_forward.1} parent=1 // pred_region
      _
    $region33: #{autoencoder_forward.1} parent=1 // pred_fallthru
      _
    // Predicated region
    $region34: #{autoencoder_forward.1} parent=1 // pred_check
      _
    $region35: #{autoencoder_forward.1} parent=1 // pred_check_branch
      %40 = sbr.rel (0) target = $region37
    $region36: #{autoencoder_forward.1} parent=1 // pred_region
      _
    $region37: #{autoencoder_forward.1} parent=1 // pred_fallthru
      _
    // Predicated region
    $region38: #{autoencoder_forward.1} parent=1 // pred_check
      _
    $region39: #{autoencoder_forward.1} parent=1 // pred_check_branch
      %42 = sbr.rel (0) target = $region41
    $region40: #{autoencoder_forward.1} parent=1 // pred_region
      _
    $region41: #{autoencoder_forward.1} parent=1 // pred_fallthru
      _
    // Predicated region
    $region42: #{autoencoder_forward.1} parent=1 // pred_check
      _
    $region43: #{autoencoder_forward.1} parent=1 // pred_check_branch
      %44 = sbr.rel (0) target = $region45
    $region44: #{autoencoder_forward.1} parent=1 // pred_region
      _
    $region45: #{autoencoder_forward.1} parent=1 // pred_fallthru
      _
    // Predicated region
    $region46: #{autoencoder_forward.1} parent=1 // pred_check
      _
    $region47: #{autoencoder_forward.1} parent=1 // pred_check_branch
      %46 = sbr.rel (0) target = $region49
    $region48: #{autoencoder_forward.1} parent=1 // pred_region
      _
    $region49: #{autoencoder_forward.1} parent=1 // pred_fallthru
      _
    // Predicated region
    $region50: #{autoencoder_forward.1} parent=1 // pred_check
      _
    $region51: #{autoencoder_forward.1} parent=1 // pred_check_branch
      %48 = sbr.rel (0) target = $region53
    $region52: #{autoencoder_forward.1} parent=1 // pred_region
      _
    $region53: #{autoencoder_forward.1} parent=1 // pred_fallthru
      _
    // Predicated region
    $region54: #{autoencoder_forward.1} parent=1 // pred_check
      _
    $region55: #{autoencoder_forward.1} parent=1 // pred_check_branch
      %50 = sbr.rel (0) target = $region57
    $region56: #{autoencoder_forward.1} parent=1 // pred_region
      _
    $region57: #{autoencoder_forward.1} parent=1 // pred_fallthru
      _
    // Predicated region
    $region58: #{autoencoder_forward.1} parent=1 // pred_check
      _
    $region59: #{autoencoder_forward.1} parent=1 // pred_check_branch
      %52 = sbr.rel (0) target = $region61
    $region60: #{autoencoder_forward.1} parent=1 // pred_region
      _
    $region61: #{autoencoder_forward.1} parent=1 // pred_fallthru
      _
    // Predicated region
    $region62: #{autoencoder_forward.1} parent=1 // pred_check
      _
    $region63: #{autoencoder_forward.1} parent=1 // pred_check_branch
      %54 = sbr.rel (0) target = $region65
    $region64: #{autoencoder_forward.1} parent=1 // pred_region
      _
    $region65: #{autoencoder_forward.1} parent=1 // pred_fallthru
      _
    // Predicated region
    $region66: #{autoencoder_forward.1} parent=1 // pred_check
      _
    $region67: #{autoencoder_forward.1} parent=1 // pred_check_branch
      %56 = sbr.rel (0) target = $region69
    $region68: #{autoencoder_forward.1} parent=1 // pred_region
      _
    $region69: #{autoencoder_forward.1} parent=1 // pred_fallthru
      _
    %v58 = vld [vmem:[%s0] sm:$0xff]
    %v59 = vld [vmem:[%s0 + $0x8] sm:$0xff]
    %v60 = vpack.c.bf16 %v59, %v58
    %v61 = vld [vmem:[%s1] sm:$0xf]
    %v62 = vld [vmem:[%s1 + $0x4] sm:$0xf]
    %v63 = vld [vmem:[%s1 + $0x8] sm:$0xf]
    %v64 = vld [vmem:[%s1 + $0xc] sm:$0xf]
    %v65 = vld [vmem:[%s1 + $0x10] sm:$0xf]
    %v66 = vld [vmem:[%s1 + $0x14] sm:$0xf]
    %v67 = vld [vmem:[%s1 + $0x18] sm:$0xf]
    %v68 = vld [vmem:[%s1 + $0x1c] sm:$0xf]
    %v69 = vld [vmem:[%s1 + $0x20] sm:$0xf]
    %v70 = vld [vmem:[%s1 + $0x24] sm:$0xf]
    %v71 = vld [vmem:[%s1 + $0x28] sm:$0xf]
    %v72 = vld [vmem:[%s1 + $0x2c] sm:$0xf]
    %v73 = vld [vmem:[%s1 + $0x30] sm:$0xf]
    %v74 = vld [vmem:[%s1 + $0x34] sm:$0xf]
    %v75 = vld [vmem:[%s1 + $0x38] sm:$0xf]
    %v76 = vld [vmem:[%s1 + $0x3c] sm:$0xf]
    %v77 = vld [vmem:[%s2] sm:$0x1]
    %v79 = vperm.slane %v77, 0
    %v97 = vunpack.c.l.b16 %v61
    %v98 = vunpack.c.l.b16 %v62
    %v99 = vunpack.c.l.b16 %v63
    %v100 = vunpack.c.l.b16 %v64
    %v101 = vunpack.c.l.b16 %v65
    %v102 = vunpack.c.l.b16 %v66
    %v103 = vunpack.c.l.b16 %v67
    %v104 = vunpack.c.l.b16 %v68
    %v105 = vunpack.c.l.b16 %v69
    %v106 = vunpack.c.l.b16 %v70
    %v107 = vunpack.c.l.b16 %v71
    %v108 = vunpack.c.l.b16 %v72
    %v109 = vunpack.c.l.b16 %v73
    %v110 = vunpack.c.l.b16 %v74
    %v111 = vunpack.c.l.b16 %v75
    %v112 = vunpack.c.l.b16 %v76
    %v113 = vpack.c.b16 %v98, %v97
    %v114 = vpack.c.b16 %v100, %v99
    %v115 = vpack.c.b16 %v102, %v101
    %v116 = vpack.c.b16 %v104, %v103
    %v117 = vpack.c.b16 %v106, %v105
    %v118 = vpack.c.b16 %v108, %v107
    %v119 = vpack.c.b16 %v110, %v109
    %v120 = vpack.c.b16 %v112, %v111
    %129 = vmatpush.bf16.msra.mxu0 %v120
    %130 = vmatpush.bf16.msra.mxu0 %v119
    %131 = vmatpush.bf16.msra.mxu0 %v118
    %132 = vmatpush.bf16.msra.mxu0 %v117
    %133 = vmatpush.bf16.msra.mxu0 %v116
    %134 = vmatpush.bf16.msra.mxu0 %v115
    %135 = vmatpush.bf16.msra.mxu0 %v114
    %136 = vmatpush.bf16.msra.mxu0 %v113
    %137 = vmatmul.bf16.gmra.mxu0 %v60
    %v138 = vpop.f32.mrf.mxu0
    %v139 = vadd.f32 %v79, %v138
    %v140 = vpop.f32.mrf.mxu0
    %v141 = vadd.f32 %v79, %v140
    %142 = vdwg.mxu0
    %v143 = vmax.f32 %v139, 0.0
    %v144 = vmax.f32 %v141, 0.0
    %v145 = vpack.c.bf16 %v144, %v143
    %v146 = vld [vmem:[%s3] sm:$0xf]
    %v147 = vld [vmem:[%s3 + $0x4] sm:$0xf]
    %v148 = vld [vmem:[%s3 + $0x8] sm:$0xf]
    %v149 = vld [vmem:[%s3 + $0xc] sm:$0xf]
    %v150 = vld [vmem:[%s3 + $0x10] sm:$0xf]
    %v151 = vld [vmem:[%s3 + $0x14] sm:$0xf]
    %v152 = vld [vmem:[%s3 + $0x18] sm:$0xf]
    %v153 = vld [vmem:[%s3 + $0x1c] sm:$0xf]
    %v154 = vld [vmem:[%s4] sm:$0x1]
    %v156 = vperm.slane %v154, 0
    %v166 = vunpack.c.l.b16 %v146
    %v167 = vunpack.c.l.b16 %v147
    %v168 = vunpack.c.l.b16 %v148
    %v169 = vunpack.c.l.b16 %v149
    %v170 = vunpack.c.l.b16 %v150
    %v171 = vunpack.c.l.b16 %v151
    %v172 = vunpack.c.l.b16 %v152
    %v173 = vunpack.c.l.b16 %v153
    %v174 = vpack.c.b16 %v167, %v166
    %v175 = vpack.c.b16 %v169, %v168
    %v176 = vpack.c.b16 %v171, %v170
    %v177 = vpack.c.b16 %v173, %v172
    %vm182 = vcmask 523264
    %v184 = vsel %vm182, %v145, 0
    %186 = vmatpush.bf16.msra.mxu0 0
    %187 = vmatpush.bf16.msra.mxu0 0
    %188 = vmatpush.bf16.msra.mxu0 0
    %189 = vmatpush.bf16.msra.mxu0 0
    %190 = vmatpush.bf16.msra.mxu0 %v177
    %191 = vmatpush.bf16.msra.mxu0 %v176
    %192 = vmatpush.bf16.msra.mxu0 %v175
    %193 = vmatpush.bf16.msra.mxu0 %v174
    %194 = vmatmul.bf16.gmra.mxu0 %v184
    %v195 = vpop.f32.mrf.mxu0
    %v196 = vadd.f32 %v156, %v195
    %v197 = vpop.f32.mrf.mxu0
    %v198 = vadd.f32 %v156, %v197
    %199 = vdwg.mxu0
    %v200 = vmax.f32 %v196, 0.0
    %v201 = vmax.f32 %v198, 0.0
    %v202 = vpack.c.bf16 %v201, %v200
    %v203 = vld [vmem:[%s5] sm:$0xf]
    %v204 = vld [vmem:[%s5 + $0x4] sm:$0xf]
    %v205 = vld [vmem:[%s5 + $0x8] sm:$0xf]
    %v206 = vld [vmem:[%s5 + $0xc] sm:$0xf]
    %v207 = vld [vmem:[%s6] sm:$0x1]
    %v209 = vperm.slane %v207, 0
    %v215 = vunpack.c.l.b16 %v203
    %v216 = vunpack.c.l.b16 %v204
    %v217 = vunpack.c.l.b16 %v205
    %v218 = vunpack.c.l.b16 %v206
    %v219 = vpack.c.b16 %v216, %v215
    %v220 = vpack.c.b16 %v218, %v217
    %vm223 = vcmask 261120
    %v225 = vsel %vm223, %v202, 0
    %227 = vmatpush.bf16.msra.mxu0 0
    %228 = vmatpush.bf16.msra.mxu0 0
    %229 = vmatpush.bf16.msra.mxu0 0
    %230 = vmatpush.bf16.msra.mxu0 0
    %231 = vmatpush.bf16.msra.mxu0 0
    %232 = vmatpush.bf16.msra.mxu0 0
    %233 = vmatpush.bf16.msra.mxu0 %v220
    %234 = vmatpush.bf16.msra.mxu0 %v219
    %235 = vmatmul.bf16.gmra.mxu0 %v225
    %v236 = vpop.f32.mrf.mxu0
    %v237 = vadd.f32 %v209, %v236
    %v238 = vpop.f32.mrf.mxu0
    %v239 = vadd.f32 %v209, %v238
    %240 = vdwg.mxu0
    %v241 = vmax.f32 %v237, 0.0
    %v242 = vmax.f32 %v239, 0.0
    %v243 = vpack.c.bf16 %v242, %v241
    %v244 = vld [vmem:[%s7] sm:$0xf]
    %v245 = vld [vmem:[%s7 + $0x4] sm:$0xf]
    %v246 = vld [vmem:[%s7 + $0x8] sm:$0xf]
    %v247 = vld [vmem:[%s7 + $0xc] sm:$0xf]
    %v248 = vld [vmem:[%s8] sm:$0x1]
    %v250 = vperm.slane %v248, 0
    %v256 = vunpack.c.l.b16 %v244
    %v257 = vunpack.c.l.b16 %v245
    %v258 = vunpack.c.l.b16 %v246
    %v259 = vunpack.c.l.b16 %v247
    %v260 = vpack.c.b16 %v257, %v256
    %v261 = vpack.c.b16 %v259, %v258
    %v265 = vsel %vm223, %v243, 0
    %267 = vmatpush.bf16.msra.mxu0 0
    %268 = vmatpush.bf16.msra.mxu0 0
    %269 = vmatpush.bf16.msra.mxu0 0
    %270 = vmatpush.bf16.msra.mxu0 0
    %271 = vmatpush.bf16.msra.mxu0 0
    %272 = vmatpush.bf16.msra.mxu0 0
    %273 = vmatpush.bf16.msra.mxu0 %v261
    %274 = vmatpush.bf16.msra.mxu0 %v260
    %275 = vmatmul.bf16.gmra.mxu0 %v265
    %v276 = vpop.f32.mrf.mxu0
    %v277 = vadd.f32 %v250, %v276
    %v278 = vpop.f32.mrf.mxu0
    %v279 = vadd.f32 %v250, %v278
    %280 = vdwg.mxu0
    %v281 = vmax.f32 %v277, 0.0
    %v282 = vmax.f32 %v279, 0.0
    %v283 = vpack.c.bf16 %v282, %v281
    %v284 = vld [vmem:[%s9] sm:$0xf]
    %v285 = vld [vmem:[%s9 + $0x4] sm:$0xf]
    %v286 = vld [vmem:[%s10] sm:$0x1]
    %v288 = vperm.slane %v286, 0
    %v292 = vunpack.c.l.b16 %v284
    %v293 = vunpack.c.l.b16 %v285
    %v294 = vpack.c.b16 %v293, %v292
    %vm296 = vcmask 130048
    %v298 = vsel %vm296, %v283, 0
    %300 = vmatpush.bf16.msra.mxu0 0
    %301 = vmatpush.bf16.msra.mxu0 0
    %302 = vmatpush.bf16.msra.mxu0 0
    %303 = vmatpush.bf16.msra.mxu0 0
    %304 = vmatpush.bf16.msra.mxu0 0
    %305 = vmatpush.bf16.msra.mxu0 0
    %306 = vmatpush.bf16.msra.mxu0 0
    %307 = vmatpush.bf16.msra.mxu0 %v294
    %308 = vmatmul.bf16.gmra.mxu0 %v298
    %v309 = vpop.f32.mrf.mxu0
    %v310 = vadd.f32 %v288, %v309
    %v311 = vpop.f32.mrf.mxu0
    %v312 = vadd.f32 %v288, %v311
    %313 = vdwg.mxu0
    %v314 = vmax.f32 %v310, 0.0
    %v315 = vmax.f32 %v312, 0.0
    %v316 = vpack.c.bf16 %v315, %v314
    %v317 = vld [vmem:[%s11] sm:$0xf]
    %v318 = vld [vmem:[%s11 + $0x4] sm:$0xf]
    %v319 = vld [vmem:[%s11 + $0x8] sm:$0xf]
    %v320 = vld [vmem:[%s11 + $0xc] sm:$0xf]
    %v321 = vld [vmem:[%s12] sm:$0x1]
    %v323 = vperm.slane %v321, 0
    %v329 = vunpack.c.l.b16 %v317
    %v330 = vunpack.c.l.b16 %v318
    %v331 = vunpack.c.l.b16 %v319
    %v332 = vunpack.c.l.b16 %v320
    %v333 = vpack.c.b16 %v330, %v329
    %v334 = vpack.c.b16 %v332, %v331
    %v338 = vsel %vm223, %v316, 0
    %340 = vmatpush.bf16.msra.mxu0 0
    %341 = vmatpush.bf16.msra.mxu0 0
    %342 = vmatpush.bf16.msra.mxu0 0
    %343 = vmatpush.bf16.msra.mxu0 0
    %344 = vmatpush.bf16.msra.mxu0 0
    %345 = vmatpush.bf16.msra.mxu0 0
    %346 = vmatpush.bf16.msra.mxu0 %v334
    %347 = vmatpush.bf16.msra.mxu0 %v333
    %348 = vmatmul.bf16.gmra.mxu0 %v338
    %v349 = vpop.f32.mrf.mxu0
    %v350 = vadd.f32 %v323, %v349
    %v351 = vpop.f32.mrf.mxu0
    %v352 = vadd.f32 %v323, %v351
    %353 = vdwg.mxu0
    %v354 = vmax.f32 %v350, 0.0
    %v355 = vmax.f32 %v352, 0.0
    %v356 = vpack.c.bf16 %v355, %v354
    %v357 = vld [vmem:[%s13] sm:$0xf]
    %v358 = vld [vmem:[%s13 + $0x4] sm:$0xf]
    %v359 = vld [vmem:[%s13 + $0x8] sm:$0xf]
    %v360 = vld [vmem:[%s13 + $0xc] sm:$0xf]
    %v361 = vld [vmem:[%s14] sm:$0x1]
    %v363 = vperm.slane %v361, 0
    %v369 = vunpack.c.l.b16 %v357
    %v370 = vunpack.c.l.b16 %v358
    %v371 = vunpack.c.l.b16 %v359
    %v372 = vunpack.c.l.b16 %v360
    %v373 = vpack.c.b16 %v370, %v369
    %v374 = vpack.c.b16 %v372, %v371
    %v378 = vsel %vm223, %v356, 0
    %380 = vmatpush.bf16.msra.mxu0 0
    %381 = vmatpush.bf16.msra.mxu0 0
    %382 = vmatpush.bf16.msra.mxu0 0
    %383 = vmatpush.bf16.msra.mxu0 0
    %384 = vmatpush.bf16.msra.mxu0 0
    %385 = vmatpush.bf16.msra.mxu0 0
    %386 = vmatpush.bf16.msra.mxu0 %v374
    %387 = vmatpush.bf16.msra.mxu0 %v373
    %388 = vmatmul.bf16.gmra.mxu0 %v378
    %v389 = vpop.f32.mrf.mxu0
    %v390 = vadd.f32 %v363, %v389
    %v391 = vpop.f32.mrf.mxu0
    %v392 = vadd.f32 %v363, %v391
    %393 = vdwg.mxu0
    %v394 = vmax.f32 %v390, 0.0
    %v395 = vmax.f32 %v392, 0.0
    %v396 = vpack.c.bf16 %v395, %v394
    %v397 = vld [vmem:[%s15] sm:$0xf]
    %v398 = vld [vmem:[%s15 + $0x4] sm:$0xf]
    %v399 = vld [vmem:[%s15 + $0x8] sm:$0xf]
    %v400 = vld [vmem:[%s15 + $0xc] sm:$0xf]
    %v401 = vld [vmem:[%s15 + $0x10] sm:$0xf]
    %v402 = vld [vmem:[%s15 + $0x14] sm:$0xf]
    %v403 = vld [vmem:[%s15 + $0x18] sm:$0xf]
    %v404 = vld [vmem:[%s15 + $0x1c] sm:$0xf]
    %v405 = vld [vmem:[%s16] sm:$0x1]
    %v407 = vperm.slane %v405, 0
    %v417 = vunpack.c.l.b16 %v397
    %v418 = vunpack.c.l.b16 %v398
    %v419 = vunpack.c.l.b16 %v399
    %v420 = vunpack.c.l.b16 %v400
    %v421 = vunpack.c.l.b16 %v401
    %v422 = vunpack.c.l.b16 %v402
    %v423 = vunpack.c.l.b16 %v403
    %v424 = vunpack.c.l.b16 %v404
    %v425 = vpack.c.b16 %v418, %v417
    %v426 = vpack.c.b16 %v420, %v419
    %v427 = vpack.c.b16 %v422, %v421
    %v428 = vpack.c.b16 %v424, %v423
    %v434 = vsel %vm182, %v396, 0
    %436 = vmatpush.bf16.msra.mxu0 0
    %437 = vmatpush.bf16.msra.mxu0 0
    %438 = vmatpush.bf16.msra.mxu0 0
    %439 = vmatpush.bf16.msra.mxu0 0
    %440 = vmatpush.bf16.msra.mxu0 %v428
    %441 = vmatpush.bf16.msra.mxu0 %v427
    %442 = vmatpush.bf16.msra.mxu0 %v426
    %443 = vmatpush.bf16.msra.mxu0 %v425
    %444 = vmatmul.bf16.gmra.mxu0 %v434
    %v445 = vpop.f32.mrf.mxu0
    %v446 = vadd.f32 %v407, %v445
    %v447 = vpop.f32.mrf.mxu0
    %v448 = vadd.f32 %v407, %v447
    %449 = vdwg.mxu0
    %450 = vst [vmem:[#allocation2] sm:$0xff] %v446
    %451 = vst [vmem:[#allocation2 + $0x8] sm:$0xff] %v448
    // Predicated region
    $region70: #{autoencoder_forward.1} parent=1 // pred_check
      _
    $region71: #{autoencoder_forward.1} parent=1 // pred_check_branch
      %453 = sbr.rel (0) target = $region73
    $region72: #{autoencoder_forward.1} parent=1 // pred_region
      %455 = vsyncadd [#allocation3], 0
      %s456 = sshll.u32 [#allocation2], 4
      %s457 = int_to_ptr.vmem [resolvable:$true] %s456
      %s458 = sshll.u32 %s17, 4
      %s459 = int_to_ptr.hbm [resolvable:$true] %s458
      %464 = dma.vmem_to_hbm [thread:$0]  %s457, 256, %s459, [#allocation3], 128, 128, 8
    $region73: #{autoencoder_forward.1} parent=1 // pred_fallthru
      _
    // Predicated region
    $region74: #{autoencoder_forward.1} parent=1 // pred_check
      _
    $region75: #{autoencoder_forward.1} parent=1 // pred_check_branch
      %466 = sbr.rel (0) target = $region77
    $region76: #{autoencoder_forward.1} parent=1 // pred_region
      %468 = dma.done [#allocation3], 256
    $region77: #{autoencoder_forward.1} parent=1 // pred_fallthru
      _
    %469 = vsyncpa [#allocation3], 1

</llo_original>
